<compile_context>
chip_gen: v7x
topology: tpu7x:2x2x1
jax: 0.10.0
libtpu: 0.0.40
codegen_flags: <defaults>
</compile_context>

<pallas_src>
import numpy as np
import jax
import jax.numpy as jnp
from jax.experimental import pallas as pl
from jax.experimental.pallas import tpu as pltpu


LANE = 128  # TPU lane width


def _round_up(x, m):
    return ((x + m - 1) // m) * m


def _pick_tn(Dp, budget_bytes=4 * 1024 * 1024):
    """Largest tn (multiple of 128, divides Dp) whose double-buffered bf16
    (Dp x tn) W strip fits the VMEM budget."""
    best = LANE
    for tn in range(LANE, Dp + 1, LANE):
        if Dp % tn == 0 and 2 * Dp * tn * 2 <= budget_bytes:
            best = tn
    return best


# ----------------------------------------------------------------------------
# Fused kernel:  out[e] = tanh(y[e] @ W[e] + b[e]) * t   (one element-block /
# output-strip per grid step; full-K strips so there is no reduction axis)
#   t : (1, 1)      f32  in SMEM
#   y : (1, Dp)     bf16 full-K strip for this tuple element
#   W : (1, Dp, tn) bf16 column strip of this element's weight block
#   b : (1, tn)     f32
#   o : (1, tn)     f32
# ----------------------------------------------------------------------------
def _blockdiag_linear_tanh_scale_kernel(t_ref, y_ref, w_ref, b_ref, o_ref):
    t = t_ref[0, 0]                                   # scalar from SMEM
    acc = jnp.dot(y_ref[...], w_ref[0],               # bf16 x bf16 -> f32 acc
                  preferred_element_type=jnp.float32)
    o_ref[...] = (jnp.tanh(acc + b_ref[...]) * t).astype(o_ref.dtype)


def _build_fused_call(E, Dp, tn):
    n_j = Dp // tn
    grid = (E, n_j)
    return pl.pallas_call(
        _blockdiag_linear_tanh_scale_kernel,
        out_shape=jax.ShapeDtypeStruct((1, E * Dp), jnp.float32),
        grid_spec=pltpu.PrefetchScalarGridSpec(
            num_scalar_prefetch=0,
            grid=grid,
            in_specs=[
                pl.BlockSpec(memory_space=pltpu.SMEM),                   # t (1,1)
                pl.BlockSpec((1, Dp), lambda e, j: (0, e)),              # y strip
                pl.BlockSpec((1, Dp, tn), lambda e, j: (e, 0, j)),       # W strip
                pl.BlockSpec((1, tn), lambda e, j: (0, e * n_j + j)),    # b
            ],
            out_specs=pl.BlockSpec((1, tn), lambda e, j: (0, e * n_j + j)),
        ),
        compiler_params=pltpu.CompilerParams(
            dimension_semantics=("parallel", "parallel"),
            vmem_limit_bytes=32 * 1024 * 1024),
    )


# ----------------------------------------------------------------------------
# _flat_to_shape (plain-JAX glue, mirrors the PyTorch helper exactly)
# ----------------------------------------------------------------------------
def _flat_to_shape(tensor, length, shapes):
    tensor_list = []
    total = 0
    for shape in shapes:
        numel = int(np.prod(shape)) if len(shape) > 0 else 1
        next_total = total + numel
        tensor_list.append(tensor[..., total:next_total].reshape((*length, *shape)))
        total = next_total
    return tuple(tensor_list)


# ----------------------------------------------------------------------------
# _TupleInputOnlyFunc equivalent
# ----------------------------------------------------------------------------
class TupleInputOnlyFunc:
    def __init__(self, base_func, shapes):
        self.base_func = base_func
        self.shapes = shapes

    def __call__(self, t, y):
        return self.base_func(t, _flat_to_shape(y, (), self.shapes))


def make_base_func(shapes, key):
    """Synthetic base_func: per-element linear+tanh scaled by t. Weights are
    packed as a (E, Dp, Dp) block stack so only the live (diagonal) blocks are
    ever streamed from HBM, in a single pallas_call per evaluation."""
    numels = [int(np.prod(s)) if len(s) > 0 else 1 for s in shapes]
    E = len(numels)
    Dp = _round_up(max(numels), LANE)
    tn = _pick_tn(Dp)

    # Per-element params, packed once at build time.
    W_pack = np.zeros((E, Dp, Dp), np.float32)
    b_pack = np.zeros((1, E * Dp), np.float32)
    W_true = []   # bf16-rounded (D x D) copies, for reference checking
    b_true = []
    for i, D in enumerate(numels):
        kw, kb = jax.random.split(jax.random.fold_in(key, i))
        W = np.asarray(jax.random.normal(kw, (D, D), dtype=jnp.float32)) / np.sqrt(D)
        b = np.asarray(jax.random.normal(kb, (D,), dtype=jnp.float32)) * 0.1
        W_pack[i, :D, :D] = W
        b_pack[0, i * Dp:i * Dp + D] = b
        W_true.append(np.asarray(jnp.asarray(W, jnp.bfloat16), np.float32))
        b_true.append(b)

    W_bf16 = jnp.asarray(W_pack, dtype=jnp.bfloat16)   # cast once at build time
    b_f32 = jnp.asarray(b_pack, dtype=jnp.float32)

    fused_call = _build_fused_call(E, Dp, tn)

    @jax.jit
    def fused_eval(t, y_tuple):
        # Pack tuple elements into one lane-dense (1, E*Dp) bf16 row
        # (element i occupies lanes [i*Dp, i*Dp + D_i), rest zero padding).
        segs = []
        for yi, D in zip(y_tuple, numels):
            seg = yi.reshape(-1).astype(jnp.bfloat16)
            if D < Dp:
                seg = jnp.pad(seg, (0, Dp - D))
            segs.append(seg)
        y_row = jnp.concatenate(segs).reshape(1, E * Dp)
        t2 = jnp.asarray(t, dtype=jnp.float32).reshape(1, 1)
        out = fused_call(t2, y_row, W_bf16, b_f32)
        # Un-pack: slice each element's live lanes and reshape, all in-jit.
        res = []
        for i, (D, s) in enumerate(zip(numels, shapes)):
            res.append(out[0, i * Dp:i * Dp + D].reshape(s))
        return tuple(res)

    def base_func(t, y_tuple):
        return fused_eval(t, y_tuple)

    # Expose params for reference checking.
    base_func.W_true = W_true
    base_func.b_true = b_true
    return base_func


if __name__ == "__main__":
    key = jax.random.PRNGKey(0)
    shapes = ((4, 16), (8, 8))                 # tuple-state shapes, numel = 64 each
    total = sum(int(np.prod(s)) for s in shapes)

    k_y, k_p = jax.random.split(key)
    y = jax.random.normal(k_y, (total,), dtype=jnp.float32)   # flat state vector
    t = jnp.float32(0.5)

    base_func = make_base_func(shapes, k_p)
    func = TupleInputOnlyFunc(base_func, shapes)

    out = func(t, y)
    out = jax.tree_util.tree_map(jax.block_until_ready, out)

    # sanity: output is a tuple matching `shapes`
    assert isinstance(out, tuple) and len(out) == len(shapes)
    for o, s in zip(out, shapes):
        assert o.shape == s, (o.shape, s)

    # numeric check vs. an f32 reference on the bf16-rounded inputs
    y_tuple = _flat_to_shape(y, (), shapes)
    for i, (o, s) in enumerate(zip(out, shapes)):
        yi = np.asarray(y_tuple[i]).reshape(-1)
        yi_bf = np.asarray(jnp.asarray(yi, jnp.bfloat16), np.float32)
        ref = np.tanh(yi_bf @ base_func.W_true[i] + base_func.b_true[i]) * float(t)
        np.testing.assert_allclose(np.asarray(o).reshape(-1), ref,
                                   rtol=2e-2, atol=2e-2)

    print("KERNEL_OK")
</pallas_src>

<mosaic_0001>
module attributes {stable_mosaic.version = 11 : i64} {
  func.func @_blockdiag_linear_tanh_scale_kernel(%arg0: i32, %arg1: i32, %arg2: memref<1x1xf32, #tpu.memory_space<smem>>, %arg3: memref<1x128xbf16, #tpu.memory_space<vmem>>, %arg4: memref<1x128x128xbf16, #tpu.memory_space<vmem>>, %arg5: memref<1x128xf32, #tpu.memory_space<vmem>>, %arg6: memref<1x128xf32, #tpu.memory_space<vmem>>) attributes {dimension_semantics = [#tpu.dimension_semantics<parallel>, #tpu.dimension_semantics<parallel>], iteration_bounds = array<i64: 2, 1>, scalar_prefetch = 0 : i64, scratch_operands = 0 : i64, tpu.core_type = #tpu.core_type<tc>, window_params = [{transform_indices = @transform_0, window_bounds = array<i64: 1, 1>}, {transform_indices = @transform_1, window_bounds = array<i64: 1, 128>}, {transform_indices = @transform_2, window_bounds = array<i64: 1, 128, 128>}, {transform_indices = @transform_3, window_bounds = array<i64: 1, 128>}, {transform_indices = @transform_4, window_bounds = array<i64: 1, 128>}]} {
    %c0 = arith.constant 0 : index
    %c0_0 = arith.constant 0 : index
    %0 = memref.load %arg2[%c0, %c0_0] : memref<1x1xf32, #tpu.memory_space<smem>>
    %c0_1 = arith.constant 0 : index
    %c0_2 = arith.constant 0 : index
    %1 = vector.load %arg3[%c0_1, %c0_2] : memref<1x128xbf16, #tpu.memory_space<vmem>>, vector<1x128xbf16>
    %c0_3 = arith.constant 0 : index
    %c0_4 = arith.constant 0 : index
    %c0_5 = arith.constant 0 : index
    %2 = vector.load %arg4[%c0_3, %c0_4, %c0_5] : memref<1x128x128xbf16, #tpu.memory_space<vmem>>, vector<1x128x128xbf16>
    %3 = vector.shape_cast %2 : vector<1x128x128xbf16> to vector<128x128xbf16>
    %cst = arith.constant dense<0.000000e+00> : vector<1x128xf32>
    %4 = tpu.matmul %1, %3, %cst {dimension_numbers = #tpu.dot_dimension_numbers<[1], [0], [0], [1], [0, 0, 1, 1], [], []>} : vector<1x128xbf16>, vector<128x128xbf16>, vector<1x128xf32> -> vector<1x128xf32>
    %c0_6 = arith.constant 0 : index
    %c0_7 = arith.constant 0 : index
    %5 = vector.load %arg5[%c0_6, %c0_7] : memref<1x128xf32, #tpu.memory_space<vmem>>, vector<1x128xf32>
    %6 = arith.addf %4, %5 : vector<1x128xf32>
    %7 = math.tanh %6 : vector<1x128xf32>
    %8 = vector.broadcast %0 : f32 to vector<1x128xf32>
    %9 = arith.mulf %7, %8 : vector<1x128xf32>
    %c0_8 = arith.constant 0 : index
    %c0_9 = arith.constant 0 : index
    %10 = vector.load %arg6[%c0_8, %c0_9] : memref<1x128xf32, #tpu.memory_space<vmem>>, vector<1x128xf32>
    tpu.vector_store %arg6[%c0_8, %c0_9], %9 {strides = array<i32>} : memref<1x128xf32, #tpu.memory_space<vmem>>, vector<1x128xf32>,
    return
  }
  func.func @transform_0(%arg0: i32, %arg1: i32) -> (i32, i32) {
    %c0_i32 = arith.constant 0 : i32
    %c0_i32_0 = arith.constant 0 : i32
    %c0_i32_1 = arith.constant 0 : i32
    return %c0_i32, %c0_i32_0 : i32, i32
  }
  func.func @transform_1(%arg0: i32, %arg1: i32) -> (i32, i32) {
    %c0_i32 = arith.constant 0 : i32
    %c0_i32_0 = arith.constant 0 : i32
    return %c0_i32, %arg0 : i32, i32
  }
  func.func @transform_2(%arg0: i32, %arg1: i32) -> (i32, i32, i32) {
    %c0_i32 = arith.constant 0 : i32
    %c0_i32_0 = arith.constant 0 : i32
    return %arg0, %c0_i32, %arg1 : i32, i32, i32
  }
  func.func @transform_3(%arg0: i32, %arg1: i32) -> (i32, i32) {
    %c1_i32 = arith.constant 1 : i32
    %0 = arith.muli %arg0, %c1_i32 : i32
    %1 = arith.addi %0, %arg1 : i32
    %c0_i32 = arith.constant 0 : i32
    %c0_i32_0 = arith.constant 0 : i32
    return %c0_i32, %1 : i32, i32
  }
  func.func @transform_4(%arg0: i32, %arg1: i32) -> (i32, i32) {
    %c1_i32 = arith.constant 1 : i32
    %0 = arith.muli %arg0, %c1_i32 : i32
    %1 = arith.addi %0, %arg1 : i32
    %c0_i32 = arith.constant 0 : i32
    %c0_i32_0 = arith.constant 0 : i32
    return %c0_i32, %1 : i32, i32
  }
}

</mosaic_0001>

<llo_original>
// kernel: squeeze.2
$region0: #{squeeze.2}
  %s0 = inlined_call_operand.vmem [shape: f32[64], index: 0, kind: input, shape index: {}]
  %s1 = inlined_call_operand.hbm [shape: f32[4,16], index: 1, kind: output, shape index: {}]
  $region1: #{squeeze.2} parent=0
    #allocation0 [shape = 'u8[2048]{0}', space=vmem, size = 0x800, scoped, tag = 'operand span for operand 1']
    #allocation1 [shape = 's32[1]{0}', space=sflag, size = 0x4, scoped, tag = 'scoped memory for squeeze.2']
    #allocation2 [shape = 'u8[4096]{0}', space=vmem, size = 0x1000, scoped, tag = 'scoped mem for output reshape']
    #allocation3 [shape = 'u8[4096]{0}', space=vmem, size = 0x1000, scoped, tag = 'scoped mem for input reshape']
    %2 = vsyncpa [#allocation1], 0
    %s4 = sshllo.u32 0, 1
    %v5 = vld [vmem:[%s0] sm:%s4]
    %6 = vst [vmem:[#allocation3] sm:%s4] %v5
    %v7 = vld [vmem:[#allocation3] sm:$0x1]
    %vm8 = vcmask 130048
    %9 = vst.msk [vmem:[#allocation2] sm:$0x1] %vm8, %v7
    %v10 = vld [vmem:[#allocation3] sm:$0x1]
    %11 = vrot.lane.b32.xlu0 %v10, 112
    %v12 = vpop.permute.xlu0 %11
    %vm13 = vcmask 130048
    %s14 = scalar_lea.vmem [#allocation2], 1
    %15 = vst.msk [vmem:[%s14] sm:$0x1] %vm13, %v12
    %v16 = vld [vmem:[#allocation3] sm:$0x1]
    %17 = vrot.lane.b32.xlu0 %v16, 96
    %v18 = vpop.permute.xlu0 %17
    %vm19 = vcmask 130048
    %s20 = scalar_lea.vmem [#allocation2], 2
    %21 = vst.msk [vmem:[%s20] sm:$0x1] %vm19, %v18
    %v22 = vld [vmem:[#allocation3] sm:$0x1]
    %23 = vrot.lane.b32.xlu0 %v22, 80
    %v24 = vpop.permute.xlu0 %23
    %vm25 = vcmask 130048
    %s26 = scalar_lea.vmem [#allocation2], 3
    %27 = vst.msk [vmem:[%s26] sm:$0x1] %vm25, %v24
    %s29 = sshllo.u32 0, 4
    %v31 = vld [vmem:[#allocation2] sm:%s29]
    %s32 = sshllo.u32 0, 4
    %33 = vst [vmem:[#allocation0] sm:%s32] %v31
    %s35 = ssub.s32 64, 64
    %36 = vsyncadd [#allocation1], %s35
    %s38 = sshll.u32 [#allocation0], 4
    %s39 = int_to_ptr.vmem [resolvable:$true] %s38
    %41 = dma.vmem_to_hbm [thread:$0]  %s39, 64, %s1, [#allocation1]
    %42 = dma.done [#allocation1], 64
    %43 = vsyncpa [#allocation1], 1

// kernel: squeeze.3
$region0: #{squeeze.3}
  %s0 = inlined_call_operand.vmem [shape: f32[64], index: 0, kind: input, shape index: {}]
  %s1 = inlined_call_operand.hbm [shape: f32[8,8], index: 1, kind: output, shape index: {}]
  $region1: #{squeeze.3} parent=0
    #allocation0 [shape = 'u8[4096]{0}', space=vmem, size = 0x1000, scoped, tag = 'operand span for operand 1']
    #allocation1 [shape = 's32[1]{0}', space=sflag, size = 0x4, scoped, tag = 'scoped memory for squeeze.3']
    #allocation2 [shape = 'u8[4096]{0}', space=vmem, size = 0x1000, scoped, tag = 'scoped mem for input reshape']
    %2 = vsyncpa [#allocation1], 0
    %s4 = sshllo.u32 0, 1
    %v5 = vld [vmem:[%s0] sm:%s4]
    %6 = vst [vmem:[#allocation2] sm:%s4] %v5
    %v7 = vld [vmem:[#allocation2] sm:$0x1]
    %vm8 = vcmask 64512
    %9 = vst.msk [vmem:[#allocation0] sm:$0x1] %vm8, %v7
    %v10 = vld [vmem:[#allocation2] sm:$0x1]
    %11 = vrot.lane.b32.xlu0 %v10, 120
    %v12 = vpop.permute.xlu0 %11
    %vm13 = vcmask 64512
    %s14 = scalar_lea.vmem [#allocation0], 1
    %15 = vst.msk [vmem:[%s14] sm:$0x1] %vm13, %v12
    %v16 = vld [vmem:[#allocation2] sm:$0x1]
    %17 = vrot.lane.b32.xlu0 %v16, 112
    %v18 = vpop.permute.xlu0 %17
    %vm19 = vcmask 64512
    %s20 = scalar_lea.vmem [#allocation0], 2
    %21 = vst.msk [vmem:[%s20] sm:$0x1] %vm19, %v18
    %v22 = vld [vmem:[#allocation2] sm:$0x1]
    %23 = vrot.lane.b32.xlu0 %v22, 104
    %v24 = vpop.permute.xlu0 %23
    %vm25 = vcmask 64512
    %s26 = scalar_lea.vmem [#allocation0], 3
    %27 = vst.msk [vmem:[%s26] sm:$0x1] %vm25, %v24
    %v28 = vld [vmem:[#allocation2] sm:$0x1]
    %29 = vrot.lane.b32.xlu0 %v28, 96
    %v30 = vpop.permute.xlu0 %29
    %vm31 = vcmask 64512
    %s32 = scalar_lea.vmem [#allocation0], 4
    %33 = vst.msk [vmem:[%s32] sm:$0x1] %vm31, %v30
    %v34 = vld [vmem:[#allocation2] sm:$0x1]
    %35 = vrot.lane.b32.xlu0 %v34, 88
    %v36 = vpop.permute.xlu0 %35
    %vm37 = vcmask 64512
    %s38 = scalar_lea.vmem [#allocation0], 5
    %39 = vst.msk [vmem:[%s38] sm:$0x1] %vm37, %v36
    %v40 = vld [vmem:[#allocation2] sm:$0x1]
    %41 = vrot.lane.b32.xlu0 %v40, 80
    %v42 = vpop.permute.xlu0 %41
    %vm43 = vcmask 64512
    %s44 = scalar_lea.vmem [#allocation0], 6
    %45 = vst.msk [vmem:[%s44] sm:$0x1] %vm43, %v42
    %v46 = vld [vmem:[#allocation2] sm:$0x1]
    %47 = vrot.lane.b32.xlu0 %v46, 72
    %v48 = vpop.permute.xlu0 %47
    %vm49 = vcmask 64512
    %s50 = scalar_lea.vmem [#allocation0], 7
    %51 = vst.msk [vmem:[%s50] sm:$0x1] %vm49, %v48
    %s53 = ssub.s32 128, 128
    %54 = vsyncadd [#allocation1], %s53
    %s56 = sshll.u32 [#allocation0], 4
    %s57 = int_to_ptr.vmem [resolvable:$true] %s56
    %59 = dma.vmem_to_hbm [thread:$0]  %s57, 128, %s1, [#allocation1]
    %60 = dma.done [#allocation1], 128
    %61 = vsyncpa [#allocation1], 1

// kernel: fused_eval.1
$region0: #{fused_eval.1}
  #allocation0 [shape = 'u32[]', space=smem, size = 0x4, offset = 0x4, fixed_abs, tag = 'smem constant byte address 0x4 - core index']
  #allocation1 [shape = 'u32[144,128]{1,0:T(1,128)}', space=vmem, size = 0x12000, scoped, tag = 'internal scratch']
  #allocation2 [shape = 'f32[1,1]{1,0:T(1,128)S(6)}', space=smem, size = 0x200, scoped, tag = 'scoped memory for fused_eval.1']
  %s0 = inlined_call_operand.<no memory space> [shape: f32[1,1], index: 0, kind: input, shape index: {}]
  %s1 = inlined_call_operand.vmem [shape: bf16[1,256], index: 1, kind: input, shape index: {}]
  %s2 = inlined_call_operand.hbm [shape: bf16[2,128,128], index: 2, kind: input, shape index: {}]
  %s3 = inlined_call_operand.vmem [shape: f32[1,256], index: 3, kind: input, shape index: {}]
  %s4 = inlined_call_operand.vmem [shape: f32[1,256], index: 4, kind: output, shape index: {}]
  %s5 = sld [smem:[#allocation0]]
  $region53: #{fused_eval.1} parent=0
    _
  %s7 = ssub.s32 1, %s5
  %s8 = scalar_select 0, %s7, %s5
  %9 = sst [smem:[#allocation2]] %s0
  $region1: #{fused_eval.1} parent=0
    #allocation3 [shape = 'u8[65536]{0}', space=vmem, size = 0x10000, scoped, tag = 'input window, operand 2']
    #allocation4 [shape = 's32[2]{0}', space=sflag, size = 0x8, scoped, tag = 'scoped memory for fused_eval.1']
    %10 = vsyncpa [#allocation4], 0
    %s11 = scalar_lea.sflag [#allocation4], 1
    %12 = vsyncpa %s11, 0
    loop: start=0, step=1, limit=4
    $region2: #{fused_eval.1} parent=1 // loop_pre_header
      _
    $region3: #{fused_eval.1} parent=1 // loop_header
      %s14 = sphi 0, %s18
      %p15 = scmp.ge.s32.totalorder %s14, 4
      %s21 = sphi 0, %s33
      %s22 = sphi 0, %s29
      %s23 = sphi 0, %s21
      %s24 = sphi 0, %s22
      %s25 = sphi 0, %s23
      %s26 = sphi 0, %s24
      %s34 = sphi 0, %s34
      %s36 = sphi 0, %s34
      %s37 = sphi 0, %s36
      %s51 = sphi 0, %s37
      %s57 = sphi 0, %s59
      %s60 = sphi 0, %s57
      %s61 = sphi 0, %s60
      %s77 = sphi 0, %s61
      %s85 = sphi 0, %s87
      %s88 = sphi 0, %s85
      %s89 = sphi 0, %s88
      %s105 = sphi 0, %s89
      %s113 = sphi 0, %s115
      %s116 = sphi 0, %s113
      %s117 = sphi 0, %s116
      %s133 = sphi 0, %s117
      %s141 = sphi 0, %s143
      %s144 = sphi 0, %s141
      %s145 = sphi 0, %s144
      %s161 = sphi 0, %s145
    $region4: #{fused_eval.1} parent=1 // loop_header_branch
      %17 = sbr.rel (%p15) target = $region8
    $region5: #{fused_eval.1} parent=1 // loop_body
      %s19 = ssub.s32 %s14, 1
      %s20 = ssub.s32 %s14, 2
      %s27 = sadd.s32 1, %s22
      %p28 = scmp.ge.s32.totalorder %s27, 1
      %s29 = scalar_select %p28, 0, %s27
      %s30 = sadd.s32 1, %s21
      %s31 = scalar_select %p28, %s30, %s21
      %p32 = scmp.ge.s32.totalorder %s31, 2
      %s33 = scalar_select %p32, 0, %s31
      %s35 = sadd.s32 %s34, 1
      %p38 = scmp.eq.s32.totalorder %s14, 1
      %p39 = scmp.ne.s32.totalorder %s34, %s36
      %p40 = scmp.eq.s32.totalorder %s14, 0
      %p41 = por %p39, %p40
      %p42 = scmp.ne.s32.totalorder %s34, %s36
      %p43 = scmp.eq.s32.totalorder %s19, 1
      %p44 = por %p42, %p43
      %p45 = scmp.ne.s32.totalorder %s36, %s37
      %p46 = scmp.eq.s32.totalorder %s19, 0
      %p47 = por %p45, %p46
      %p48 = scmp.ne.s32.totalorder %s36, %s37
      %p49 = scmp.eq.s32.totalorder %s20, 1
      %p50 = por %p48, %p49
      %p52 = scmp.ne.s32.totalorder %s37, %s51
      %p53 = scmp.eq.s32.totalorder %s20, 0
      %p54 = por %p52, %p53
      %s55 = ssub.s32 %s21, %s33
      %p56 = scmp.eq.s32.totalorder %s55, 0
      %s58 = sadd.s32 %s57, 1
      %s59 = scalar_select %p56, %s57, %s58
      %p62 = pneg %p56
      %p63 = scmp.eq.s32.totalorder %s14, 1
      %p64 = por %p62, %p63
      %p65 = scmp.ne.s32.totalorder %s57, %s60
      %p66 = scmp.eq.s32.totalorder %s14, 0
      %p67 = por %p65, %p66
      %p68 = scmp.ne.s32.totalorder %s57, %s60
      %p69 = scmp.eq.s32.totalorder %s19, 1
      %p70 = por %p68, %p69
      %p71 = scmp.ne.s32.totalorder %s60, %s61
      %p72 = scmp.eq.s32.totalorder %s19, 0
      %p73 = por %p71, %p72
      %p74 = scmp.ne.s32.totalorder %s60, %s61
      %p75 = scmp.eq.s32.totalorder %s20, 1
      %p76 = por %p74, %p75
      %p78 = scmp.ne.s32.totalorder %s61, %s77
      %p79 = scmp.eq.s32.totalorder %s20, 0
      %p80 = por %p78, %p79
      %s81 = ssub.s32 %s21, %s33
      %s82 = ssub.s32 %s22, %s29
      %s83 = sor.u32 %s81, %s82
      %p84 = scmp.eq.s32.totalorder %s83, 0
      %s86 = sadd.s32 %s85, 1
      %s87 = scalar_select %p84, %s85, %s86
      %p90 = pneg %p84
      %p91 = scmp.eq.s32.totalorder %s14, 1
      %p92 = por %p90, %p91
      %p93 = scmp.ne.s32.totalorder %s85, %s88
      %p94 = scmp.eq.s32.totalorder %s14, 0
      %p95 = por %p93, %p94
      %p96 = scmp.ne.s32.totalorder %s85, %s88
      %p97 = scmp.eq.s32.totalorder %s19, 1
      %p98 = por %p96, %p97
      %p99 = scmp.ne.s32.totalorder %s88, %s89
      %p100 = scmp.eq.s32.totalorder %s19, 0
      %p101 = por %p99, %p100
      %p102 = scmp.ne.s32.totalorder %s88, %s89
      %p103 = scmp.eq.s32.totalorder %s20, 1
      %p104 = por %p102, %p103
      %p106 = scmp.ne.s32.totalorder %s89, %s105
      %p107 = scmp.eq.s32.totalorder %s20, 0
      %p108 = por %p106, %p107
      %s109 = sadd.s32 %s21, %s22
      %s110 = sadd.s32 %s33, %s29
      %s111 = ssub.s32 %s109, %s110
      %p112 = scmp.eq.s32.totalorder %s111, 0
      %s114 = sadd.s32 %s113, 1
      %s115 = scalar_select %p112, %s113, %s114
      %p118 = pneg %p112
      %p119 = scmp.eq.s32.totalorder %s14, 1
      %p120 = por %p118, %p119
      %p121 = scmp.ne.s32.totalorder %s113, %s116
      %p122 = scmp.eq.s32.totalorder %s14, 0
      %p123 = por %p121, %p122
      %p124 = scmp.ne.s32.totalorder %s113, %s116
      %p125 = scmp.eq.s32.totalorder %s19, 1
      %p126 = por %p124, %p125
      %p127 = scmp.ne.s32.totalorder %s116, %s117
      %p128 = scmp.eq.s32.totalorder %s19, 0
      %p129 = por %p127, %p128
      %p130 = scmp.ne.s32.totalorder %s116, %s117
      %p131 = scmp.eq.s32.totalorder %s20, 1
      %p132 = por %p130, %p131
      %p134 = scmp.ne.s32.totalorder %s117, %s133
      %p135 = scmp.eq.s32.totalorder %s20, 0
      %p136 = por %p134, %p135
      %s137 = sadd.s32 %s21, %s22
      %s138 = sadd.s32 %s33, %s29
      %s139 = ssub.s32 %s137, %s138
      %p140 = scmp.eq.s32.totalorder %s139, 0
      %s142 = sadd.s32 %s141, 1
      %s143 = scalar_select %p140, %s141, %s142
      %p146 = pneg %p140
      %p147 = scmp.eq.s32.totalorder %s14, 1
      %p148 = por %p146, %p147
      %p149 = scmp.ne.s32.totalorder %s141, %s144
      %p150 = scmp.eq.s32.totalorder %s14, 0
      %p151 = por %p149, %p150
      %p152 = scmp.ne.s32.totalorder %s141, %s144
      %p153 = scmp.eq.s32.totalorder %s19, 1
      %p154 = por %p152, %p153
      %p155 = scmp.ne.s32.totalorder %s144, %s145
      %p156 = scmp.eq.s32.totalorder %s19, 0
      %p157 = por %p155, %p156
      %p158 = scmp.ne.s32.totalorder %s144, %s145
      %p159 = scmp.eq.s32.totalorder %s20, 1
      %p160 = por %p158, %p159
      %p162 = scmp.ne.s32.totalorder %s145, %s161
      %p163 = scmp.eq.s32.totalorder %s20, 0
      %p164 = por %p162, %p163
      %p165 = scmp.le.s32.totalorder 1, %s14
      %p166 = scmp.lt.s32.totalorder %s14, 3
      %p167 = pnand %p165, %p166
      %p168 = pneg %p167
      // Predicated region
      $region9: #{fused_eval.1} parent=5 // pred_check
        _
      $region10: #{fused_eval.1} parent=5 // pred_check_branch
        %170 = sbr.rel (%p167) target = $region12
      $region11: #{fused_eval.1} parent=5 // pred_region
        %s171 = ssub.s32 %s14, 1
        // Predicated region
        $region13: #{fused_eval.1} parent=11 // pred_check
          %p172 = pneg %p47
        $region14: #{fused_eval.1} parent=11 // pred_check_branch
          %174 = sbr.rel (%p172) target = $region16
        $region15: #{fused_eval.1} parent=11 // pred_region
          _
        $region16: #{fused_eval.1} parent=11 // pred_fallthru
          _
      $region12: #{fused_eval.1} parent=5 // pred_fallthru
        _
      %p175 = scmp.lt.s32.totalorder %s14, 2
      // Predicated region
      $region17: #{fused_eval.1} parent=5 // pred_check
        %p176 = pneg %p175
      $region18: #{fused_eval.1} parent=5 // pred_check_branch
        %178 = sbr.rel (%p176) target = $region20
      $region19: #{fused_eval.1} parent=5 // pred_region
        // Predicated region
        $region21: #{fused_eval.1} parent=19 // pred_check
          %p179 = pneg %p67
        $region22: #{fused_eval.1} parent=19 // pred_check_branch
          %181 = sbr.rel (%p179) target = $region24
        $region23: #{fused_eval.1} parent=19 // pred_region
          %p182 = scmp.lt.s32.totalorder %s21, 1
          %s183 = scalar_select %p182, %s21, 1
          %s184 = scalar_lea.vmem %s1, %s183
        $region24: #{fused_eval.1} parent=19 // pred_fallthru
          _
        // Predicated region
        $region25: #{fused_eval.1} parent=19 // pred_check
          %p185 = pneg %p95
        $region26: #{fused_eval.1} parent=19 // pred_check_branch
          %187 = sbr.rel (%p185) target = $region28
        $region27: #{fused_eval.1} parent=19 // pred_region
          %s188 = sand.u32 %s85, 1
          %s189 = scalar_lea.sflag [#allocation4], %s188
          %s190 = sand.u32 %s85, 1
          %s191 = smul.addr %s190, 64
          %s192 = scalar_lea.vmem [#allocation3], %s191
          %s194 = ssub.s32 1024, 1024
          %195 = vsyncadd %s189, %s194
          %s196 = smul.addr %s21, 16
          %s197 = sadd.s32 %s22, %s196
          %s198 = smul.addr %s197, 64
          %s199 = scalar_lea.hbm %s2, %s198
          %s200 = sshll.u32 %s192, 4
          %s201 = int_to_ptr.vmem [resolvable:$true] %s200
          %206 = dma.hbm_to_vmem [thread:$0]  %s199, 1024, %s201, %s189, 64, 64, 4
        $region28: #{fused_eval.1} parent=19 // pred_fallthru
          _
        // Predicated region
        $region29: #{fused_eval.1} parent=19 // pred_check
          %p207 = pneg %p123
        $region30: #{fused_eval.1} parent=19 // pred_check_branch
          %209 = sbr.rel (%p207) target = $region32
        $region31: #{fused_eval.1} parent=19 // pred_region
          %s210 = sadd.s32 %s21, %s22
          %p211 = scmp.lt.s32.totalorder %s210, 1
          %s212 = scalar_select %p211, %s210, 1
          %s213 = scalar_lea.vmem %s3, %s212
          %s214 = sadd.s32 %s21, %s22
        $region32: #{fused_eval.1} parent=19 // pred_fallthru
          _
      $region20: #{fused_eval.1} parent=5 // pred_fallthru
        _
      %p215 = scmp.le.s32.totalorder 1, %s14
      %p216 = scmp.lt.s32.totalorder %s14, 3
      %p217 = pnand %p215, %p216
      %p218 = pneg %p217
      // Predicated region
      $region33: #{fused_eval.1} parent=5 // pred_check
        _
      $region34: #{fused_eval.1} parent=5 // pred_check_branch
        %220 = sbr.rel (%p217) target = $region36
      $region35: #{fused_eval.1} parent=5 // pred_region
        %s221 = ssub.s32 %s14, 1
        %s222 = sand.u32 %s88, 1
        %s223 = scalar_lea.sflag [#allocation4], %s222
        %s224 = sand.u32 %s88, 1
        %s225 = smul.addr %s224, 64
        %s226 = scalar_lea.vmem [#allocation3], %s225
        // Predicated region
        $region37: #{fused_eval.1} parent=35 // pred_check
          %p227 = pneg %p101
        $region38: #{fused_eval.1} parent=35 // pred_check_branch
          %229 = sbr.rel (%p227) target = $region40
        $region39: #{fused_eval.1} parent=35 // pred_region
          %230 = dma.done %s223, 1024
        $region40: #{fused_eval.1} parent=35 // pred_fallthru
          _
        %p231 = pneg %p47
        %p232 = pneg %p44
        %p233 = scmp.lt.s32.totalorder %s23, 1
        %s234 = scalar_select %p233, %s23, 1
        %s235 = scalar_lea.vmem %s1, %s234
        %p236 = pneg %p73
        %p237 = pneg %p70
        %s238 = sand.u32 %s88, 1
        %s239 = scalar_lea.sflag [#allocation4], %s238
        %s240 = sand.u32 %s88, 1
        %s241 = smul.addr %s240, 64
        %s242 = scalar_lea.vmem [#allocation3], %s241
        %p243 = pneg %p101
        %p244 = pneg %p98
        %s245 = sadd.s32 %s23, %s24
        %p246 = scmp.lt.s32.totalorder %s245, 1
        %s247 = scalar_select %p246, %s245, 1
        %s248 = scalar_lea.vmem %s3, %s247
        %p249 = pneg %p129
        %p250 = pneg %p126
        %p251 = pneg %p157
        %p252 = pneg %p154
        %s253 = sadd.s32 %s23, %s24
        %p254 = scmp.lt.s32.totalorder %s253, 1
        %s255 = scalar_select %p254, %s253, 1
        %s256 = scalar_lea.vmem %s4, %s255
        %p257 = scmp.lt.s32.totalorder %s23, 1
        %s258 = scalar_select %p257, %s23, 1
        %s259 = scalar_lea.vmem %s1, %s258
        %s260 = sadd.s32 %s23, %s24
        %p261 = scmp.lt.s32.totalorder %s260, 1
        %s262 = scalar_select %p261, %s260, 1
        %s263 = scalar_lea.vmem %s3, %s262
        %s264 = sadd.s32 %s23, %s24
        %s265 = sadd.s32 %s23, %s24
        %p266 = scmp.lt.s32.totalorder %s265, 1
        %s267 = scalar_select %p266, %s265, 1
        %s268 = scalar_lea.vmem %s4, %s267
        %s269 = sadd.s32 %s23, %s24
        %s271 = sld [smem:[#allocation2]]
        %v272 = vld [vmem:[%s259] sm:$0x1]
        %v273 = vld [vmem:[%s226] sm:$0xf]
        %v274 = vld [vmem:[%s226 + $0x4] sm:$0xf]
        %v275 = vld [vmem:[%s226 + $0x8] sm:$0xf]
        %v276 = vld [vmem:[%s226 + $0xc] sm:$0xf]
        %v277 = vld [vmem:[%s226 + $0x10] sm:$0xf]
        %v278 = vld [vmem:[%s226 + $0x14] sm:$0xf]
        %v279 = vld [vmem:[%s226 + $0x18] sm:$0xf]
        %v280 = vld [vmem:[%s226 + $0x1c] sm:$0xf]
        %v281 = vld [vmem:[%s226 + $0x20] sm:$0xf]
        %v282 = vld [vmem:[%s226 + $0x24] sm:$0xf]
        %v283 = vld [vmem:[%s226 + $0x28] sm:$0xf]
        %v284 = vld [vmem:[%s226 + $0x2c] sm:$0xf]
        %v285 = vld [vmem:[%s226 + $0x30] sm:$0xf]
        %v286 = vld [vmem:[%s226 + $0x34] sm:$0xf]
        %v287 = vld [vmem:[%s226 + $0x38] sm:$0xf]
        %v288 = vld [vmem:[%s226 + $0x3c] sm:$0xf]
        %v289 = vld [vmem:[%s263] sm:$0x1]
        %v306 = vunpack.c.l.b16 %v273
        %v307 = vunpack.c.l.b16 %v274
        %v308 = vunpack.c.l.b16 %v275
        %v309 = vunpack.c.l.b16 %v276
        %v310 = vunpack.c.l.b16 %v277
        %v311 = vunpack.c.l.b16 %v278
        %v312 = vunpack.c.l.b16 %v279
        %v313 = vunpack.c.l.b16 %v280
        %v314 = vunpack.c.l.b16 %v281
        %v315 = vunpack.c.l.b16 %v282
        %v316 = vunpack.c.l.b16 %v283
        %v317 = vunpack.c.l.b16 %v284
        %v318 = vunpack.c.l.b16 %v285
        %v319 = vunpack.c.l.b16 %v286
        %v320 = vunpack.c.l.b16 %v287
        %v321 = vunpack.c.l.b16 %v288
        %v322 = vpack.c.b16 %v307, %v306
        %v323 = vpack.c.b16 %v309, %v308
        %v324 = vpack.c.b16 %v311, %v310
        %v325 = vpack.c.b16 %v313, %v312
        %v326 = vpack.c.b16 %v315, %v314
        %v327 = vpack.c.b16 %v317, %v316
        %v328 = vpack.c.b16 %v319, %v318
        %v329 = vpack.c.b16 %v321, %v320
        %338 = vmatprep.subr.bf16.mxu0 0
        %339 = vmatpush1.bf16.msra.mxu0 %v322
        %340 = vmatprep.subr.bf16.mxu0 0
        %341 = vmatpush1.bf16.msra.mxu0 %v323
        %342 = vmatprep.subr.bf16.mxu0 0
        %343 = vmatpush1.bf16.msra.mxu0 %v324
        %344 = vmatprep.subr.bf16.mxu0 0
        %345 = vmatpush1.bf16.msra.mxu0 %v325
        %346 = vmatprep.subr.bf16.mxu0 0
        %347 = vmatpush1.bf16.msra.mxu0 %v326
        %348 = vmatprep.subr.bf16.mxu0 0
        %349 = vmatpush1.bf16.msra.mxu0 %v327
        %350 = vmatprep.subr.bf16.mxu0 0
        %351 = vmatpush1.bf16.msra.mxu0 %v328
        %352 = vmatprep.subr.bf16.mxu0 0
        %353 = vmatpush1.bf16.msra.mxu0 %v329
        %354 = vmatprep.subr.bf16.mxu0 0
        %355 = vmatpush1.bf16.msra.mxu0 0
        %356 = vmatprep.subr.bf16.mxu0 0
        %357 = vmatpush1.bf16.msra.mxu0 0
        %358 = vmatprep.subr.bf16.mxu0 0
        %359 = vmatpush1.bf16.msra.mxu0 0
        %360 = vmatprep.subr.bf16.mxu0 0
        %361 = vmatpush1.bf16.msra.mxu0 0
        %362 = vmatprep.subr.bf16.mxu0 0
        %363 = vmatpush1.bf16.msra.mxu0 0
        %364 = vmatprep.subr.bf16.mxu0 0
        %365 = vmatpush1.bf16.msra.mxu0 0
        %366 = vmatprep.subr.bf16.mxu0 0
        %367 = vmatpush1.bf16.msra.mxu0 0
        %368 = vmatprep.subr.bf16.mxu0 0
        %369 = vmatpush1.bf16.msra.mxu0 0
        %370 = vmatprep.mubr.bf16.mxu0 0
        %371 = vmatmul.mubr.bf16.gmra.mrb[0].mxu0 %v272
        %v372 = vpop.f32.mrb[0].mxu0
        %v373 = vadd.f32 %v289, %v372
        %v374 = vpop.f32.mrb[0].mxu0
        %v375 = vpop.f32.mrb[0].mxu0
        %v376 = vpop.f32.mrb[0].mxu0
        %377 = vdwg.mxu0
        %v378 = vtanh.pop %v373
        %v379 = vstv %s271
        %v380 = vmul.f32 %v378, %v379
        %381 = vst [vmem:[%s268] sm:$0x1] %v380
        %s382 = sadd.s32 %s23, %s24
        %p383 = scmp.lt.s32.totalorder %s382, 1
        %s384 = scalar_select %p383, %s382, 1
        %s385 = scalar_lea.vmem %s4, %s384
        // Predicated region
        $region41: #{fused_eval.1} parent=35 // pred_check
          %p386 = pneg %p154
        $region42: #{fused_eval.1} parent=35 // pred_check_branch
          %388 = sbr.rel (%p386) target = $region44
        $region43: #{fused_eval.1} parent=35 // pred_region
          %s389 = sadd.s32 %s23, %s24
        $region44: #{fused_eval.1} parent=35 // pred_fallthru
          _
      $region36: #{fused_eval.1} parent=5 // pred_fallthru
        _
      %p390 = scmp.le.s32.totalorder 2, %s14
      // Predicated region
      $region45: #{fused_eval.1} parent=5 // pred_check
        %p391 = pneg %p390
      $region46: #{fused_eval.1} parent=5 // pred_check_branch
        %393 = sbr.rel (%p391) target = $region48
      $region47: #{fused_eval.1} parent=5 // pred_region
        %s394 = ssub.s32 %s14, 2
        // Predicated region
        $region49: #{fused_eval.1} parent=47 // pred_check
          %p395 = pneg %p160
        $region50: #{fused_eval.1} parent=47 // pred_check_branch
          %397 = sbr.rel (%p395) target = $region52
        $region51: #{fused_eval.1} parent=47 // pred_region
          %s398 = sadd.s32 %s25, %s26
          %p399 = scmp.lt.s32.totalorder %s398, 1
          %s400 = scalar_select %p399, %s398, 1
          %s401 = scalar_lea.vmem %s4, %s400
        $region52: #{fused_eval.1} parent=47 // pred_fallthru
          _
      $region48: #{fused_eval.1} parent=5 // pred_fallthru
        _
    $region6: #{fused_eval.1} parent=1 // loop_footer
      %s18 = sadd.s32 1, %s14
    $region7: #{fused_eval.1} parent=1 // loop_footer_branch
      %13 = sbr.rel target = $region3
    $region8: #{fused_eval.1} parent=1 // loop_exit
      _
    %402 = vsyncpa [#allocation4], 1
    %s403 = scalar_lea.sflag [#allocation4], 1
    %404 = vsyncpa %s403, 1

</llo_original>
